<compile_context>
chip_gen: v5e
topology: v5e:2x2
jax: 0.10.0
libtpu: 0.0.40
codegen_flags: <defaults>
</compile_context>

<pallas_src>
import functools

import jax
import jax.numpy as jnp
from jax.experimental import pallas as pl
from jax.experimental.pallas import tpu as pltpu

NEG_SLOPE = 0.01      # default negative_slope of nn.LeakyReLU()
LANE = 128
SUBLANE = 8
SINGLE_TILE_MAX = 1024   # up to this batch size, run the whole batch as one tile
BIG_BATCH_TILE = 512     # tile size for larger batches


def _round_up(n: int, m: int) -> int:
    return ((n + m - 1) // m) * m


def _leaky_relu(v):
    return jnp.where(v > 0, v, NEG_SLOPE * v)


def mlp_kernel(x_ref, w1_ref, b1_ref, w2_ref, b2_ref, w3_ref, b3_ref,
               w4_ref, b4_ref, o_ref):
    # x arrives f32 (no wrapper-side pad/cast round trip); cast to bf16 on-chip for the MXU.
    # All matmuls accumulate in f32; bias add + LeakyReLU stay on the f32 accumulator
    # (VPU-friendly on v5e, which has no bf16 VPU) and downcast to bf16 only to feed the
    # next matmul.
    h = x_ref[...].astype(jnp.bfloat16)
    h = jnp.dot(h, w1_ref[...], preferred_element_type=jnp.float32) + b1_ref[...]
    h = _leaky_relu(h).astype(jnp.bfloat16)
    h = jnp.dot(h, w2_ref[...], preferred_element_type=jnp.float32) + b2_ref[...]
    h = _leaky_relu(h).astype(jnp.bfloat16)
    h = jnp.dot(h, w3_ref[...], preferred_element_type=jnp.float32) + b3_ref[...]
    h = _leaky_relu(h).astype(jnp.bfloat16)
    out = jnp.dot(h, w4_ref[...], preferred_element_type=jnp.float32) + b4_ref[...]
    # Identity output activation; columns beyond output_size are zero (sliced off in the
    # wrapper) so the store is lane-dense and unmasked. bf16 store halves HBM writeback.
    o_ref[...] = out.astype(o_ref.dtype)


@functools.partial(jax.jit, static_argnames=("output_size",))
def neural_network_forward(x, params, *, output_size):
    """Forward pass matching NeuralNetwork.forward (identity output activation)."""
    if x.ndim == 1:                       # x.view(1, -1) semantics from the module
        x = x.reshape(1, -1)
    w1, b1, w2, b2, w3, b3, w4, b4 = params
    B, in_size = x.shape
    out_pad = w4.shape[1]                 # lane-padded width (multiple of 128)

    # Tile selection: one big tile for small/medium batches; 512-row tiles otherwise.
    # No batch padding: a ragged last tile is handled by Pallas partial-block masking
    # (OOB input rows are unspecified but only influence OOB output rows, which are dropped).
    tm = B if B <= SINGLE_TILE_MAX else BIG_BATCH_TILE
    grid_steps = pl.cdiv(B, tm)

    def resident(shape):
        # Same block for every grid step -> stays resident in VMEM (no re-DMA).
        return pl.BlockSpec(shape, lambda i: (0, 0))

    # On v7x (2 TensorCores/chip) shard the batch grid across cores; elsewhere "parallel"
    # is a harmless no-op (1 TC/chip on v5e/v6e).
    dim_sems = ("parallel",)
    if grid_steps >= 2 and "7" in jax.devices()[0].device_kind.lower():
        dim_sems = (pltpu.CORE_PARALLEL,)

    out = pl.pallas_call(
        mlp_kernel,
        out_shape=jax.ShapeDtypeStruct((B, out_pad), jnp.bfloat16),
        grid=(grid_steps,),
        in_specs=[
            pl.BlockSpec((tm, in_size), lambda i: (i, 0)),   # x: tiled over batch
            resident(w1.shape), resident(b1.shape),
            resident(w2.shape), resident(b2.shape),
            resident(w3.shape), resident(b3.shape),
            resident(w4.shape), resident(b4.shape),
        ],
        out_specs=pl.BlockSpec((tm, out_pad), lambda i: (i, 0)),
        compiler_params=pltpu.CompilerParams(
            dimension_semantics=dim_sems,
            # Explicit limit (review TODO): worst-case working set (512-row tiles, resident
            # weights, double-buffered x/out, f32 intermediates) is < 4 MiB, so 32 MiB is
            # generous headroom and within every generation's VMEM (incl. v7x's 64 MiB).
            vmem_limit_bytes=32 * 1024 * 1024,
        ),
    )(x, w1, b1, w2, b2, w3, b3, w4, b4)

    # Slice off the lane-padding and restore f32 for parity with the f32 PyTorch module.
    return out[:, :output_size].astype(jnp.float32)


def init_params(key, input_size, output_size):
    """Deterministic init mirroring torch.nn.Linear default (U(-1/sqrt(fan_in), +)).

    Weights are stored transposed as [in_features, out_features] (kernel computes x @ W + b)
    and cast to bf16; biases stay f32 (added on the f32 accumulator).  The fc3->fc4 boundary
    is zero-padded 64 -> 128 and the final layer is zero-padded to a lane-dense 128-wide
    output; the zero padding leaves the math unchanged (LeakyReLU(0)=0, zero rows of w4
    contribute nothing) and the extra output columns are sliced off in the wrapper.
    """
    dims = [(input_size, 256), (256, 128), (128, 64), (64, output_size)]
    ws, bs = [], []
    for fan_in, fan_out in dims:
        key, kw, kb = jax.random.split(key, 3)
        bound = 1.0 / jnp.sqrt(jnp.float32(fan_in))
        ws.append(jax.random.uniform(kw, (fan_in, fan_out), jnp.float32, -bound, bound))
        bs.append(jax.random.uniform(kb, (1, fan_out), jnp.float32, -bound, bound))

    # fc3 -> fc4 boundary: pad the 64-wide activation to a full 128-lane slab.
    ws[2] = jnp.pad(ws[2], ((0, 0), (0, LANE - 64)))
    bs[2] = jnp.pad(bs[2], ((0, 0), (0, LANE - 64)))
    ws[3] = jnp.pad(ws[3], ((0, LANE - 64), (0, 0)))

    # Final layer: lane-dense 128-wide output.
    out_pad = _round_up(output_size, LANE)
    ws[3] = jnp.pad(ws[3], ((0, 0), (0, out_pad - output_size)))
    bs[3] = jnp.pad(bs[3], ((0, 0), (0, out_pad - output_size)))

    params = []
    for w, b in zip(ws, bs):
        params += [w.astype(jnp.bfloat16), b.astype(jnp.float32)]
    return tuple(params)


def reference_forward(x, params, output_size):
    """Plain-JAX reference using the same bf16-inputs / f32-accumulation recipe."""
    if x.ndim == 1:
        x = x.reshape(1, -1)
    w1, b1, w2, b2, w3, b3, w4, b4 = params
    h = x.astype(jnp.bfloat16)
    for w, b in ((w1, b1), (w2, b2), (w3, b3)):
        a = jnp.dot(h, w, preferred_element_type=jnp.float32) + b
        h = _leaky_relu(a).astype(jnp.bfloat16)
    out = jnp.dot(h, w4, preferred_element_type=jnp.float32) + b4
    return out[:, :output_size]


if __name__ == "__main__":
    key = jax.random.PRNGKey(0)
    key, kx, kp = jax.random.split(key, 3)

    batch = 2
    input_size = 32
    output_size = 10

    x = jax.random.normal(kx, (batch, input_size), jnp.float32)
    params = init_params(kp, input_size, output_size)

    out = neural_network_forward(x, params, output_size=output_size)
    out = jax.block_until_ready(out)
    ref = reference_forward(x, params, output_size)
    assert out.shape == (batch, output_size)
    assert jnp.allclose(out, ref, atol=2e-2, rtol=2e-2), float(jnp.max(jnp.abs(out - ref)))

    # Single-tile path with a ragged (non-multiple-of-8) batch — block == full array.
    key, kx2 = jax.random.split(key)
    x2 = jax.random.normal(kx2, (300, input_size), jnp.float32)
    out2 = jax.block_until_ready(neural_network_forward(x2, params, output_size=output_size))
    ref2 = reference_forward(x2, params, output_size)
    assert out2.shape == (300, output_size)
    assert jnp.allclose(out2, ref2, atol=2e-2, rtol=2e-2)

    # Multi-tile path (3 grid steps, ragged last tile) exercising the pipelined/parallel path.
    key, kx3 = jax.random.split(key)
    x3 = jax.random.normal(kx3, (1050, input_size), jnp.float32)
    out3 = jax.block_until_ready(neural_network_forward(x3, params, output_size=output_size))
    ref3 = reference_forward(x3, params, output_size)
    assert out3.shape == (1050, output_size)
    assert jnp.allclose(out3, ref3, atol=2e-2, rtol=2e-2)

    print("KERNEL_OK")
</pallas_src>

<mosaic_0001>
module attributes {stable_mosaic.version = 11 : i64} {
  func.func @mlp_kernel(%arg0: i32, %arg1: memref<2x32xf32, #tpu.memory_space<vmem>>, %arg2: memref<32x256xbf16, #tpu.memory_space<vmem>>, %arg3: memref<1x256xf32, #tpu.memory_space<vmem>>, %arg4: memref<256x128xbf16, #tpu.memory_space<vmem>>, %arg5: memref<1x128xf32, #tpu.memory_space<vmem>>, %arg6: memref<128x128xbf16, #tpu.memory_space<vmem>>, %arg7: memref<1x128xf32, #tpu.memory_space<vmem>>, %arg8: memref<128x128xbf16, #tpu.memory_space<vmem>>, %arg9: memref<1x128xf32, #tpu.memory_space<vmem>>, %arg10: memref<2x128xbf16, #tpu.memory_space<vmem>>) attributes {dimension_semantics = [#tpu.dimension_semantics<parallel>], iteration_bounds = array<i64: 1>, scalar_prefetch = 0 : i64, scratch_operands = 0 : i64, tpu.core_type = #tpu.core_type<tc>, window_params = [{transform_indices = @transform_0, window_bounds = array<i64: 2, 32>}, {pipeline_mode = #tpu.pipeline_mode<synchronous>, transform_indices = @transform_1, window_bounds = array<i64: 32, 256>}, {pipeline_mode = #tpu.pipeline_mode<synchronous>, transform_indices = @transform_2, window_bounds = array<i64: 1, 256>}, {pipeline_mode = #tpu.pipeline_mode<synchronous>, transform_indices = @transform_3, window_bounds = array<i64: 256, 128>}, {pipeline_mode = #tpu.pipeline_mode<synchronous>, transform_indices = @transform_4, window_bounds = array<i64: 1, 128>}, {pipeline_mode = #tpu.pipeline_mode<synchronous>, transform_indices = @transform_5, window_bounds = array<i64: 128, 128>}, {pipeline_mode = #tpu.pipeline_mode<synchronous>, transform_indices = @transform_6, window_bounds = array<i64: 1, 128>}, {pipeline_mode = #tpu.pipeline_mode<synchronous>, transform_indices = @transform_7, window_bounds = array<i64: 128, 128>}, {pipeline_mode = #tpu.pipeline_mode<synchronous>, transform_indices = @transform_8, window_bounds = array<i64: 1, 128>}, {transform_indices = @transform_9, window_bounds = array<i64: 2, 128>}]} {
    %c0 = arith.constant 0 : index
    %c0_0 = arith.constant 0 : index
    %0 = vector.load %arg1[%c0, %c0_0] : memref<2x32xf32, #tpu.memory_space<vmem>>, vector<2x32xf32>
    %1 = arith.truncf %0 : vector<2x32xf32> to vector<2x32xbf16>
    %c0_1 = arith.constant 0 : index
    %c0_2 = arith.constant 0 : index
    %2 = vector.load %arg2[%c0_1, %c0_2] : memref<32x256xbf16, #tpu.memory_space<vmem>>, vector<32x256xbf16>
    %cst = arith.constant dense<0.000000e+00> : vector<2x256xf32>
    %3 = tpu.matmul %1, %2, %cst {dimension_numbers = #tpu.dot_dimension_numbers<[1], [0], [0], [1], [0, 0, 1, 1], [], []>} : vector<2x32xbf16>, vector<32x256xbf16>, vector<2x256xf32> -> vector<2x256xf32>
    %c0_3 = arith.constant 0 : index
    %c0_4 = arith.constant 0 : index
    %4 = vector.load %arg3[%c0_3, %c0_4] : memref<1x256xf32, #tpu.memory_space<vmem>>, vector<1x256xf32>
    %5 = vector.broadcast %4 : vector<1x256xf32> to vector<2x256xf32>
    %6 = arith.addf %3, %5 : vector<2x256xf32>
    %cst_5 = arith.constant 0.000000e+00 : f32
    %7 = vector.broadcast %cst_5 : f32 to vector<2x256xf32>
    %8 = arith.cmpf ogt, %6, %7 : vector<2x256xf32>
    %cst_6 = arith.constant 0.00999999977 : f32
    %9 = vector.broadcast %cst_6 : f32 to vector<2x256xf32>
    %10 = arith.mulf %9, %6 : vector<2x256xf32>
    %11 = arith.select %8, %6, %10 : vector<2x256xi1>, vector<2x256xf32>
    %12 = arith.truncf %11 : vector<2x256xf32> to vector<2x256xbf16>
    %c0_7 = arith.constant 0 : index
    %c0_8 = arith.constant 0 : index
    %13 = vector.load %arg4[%c0_7, %c0_8] : memref<256x128xbf16, #tpu.memory_space<vmem>>, vector<256x128xbf16>
    %cst_9 = arith.constant dense<0.000000e+00> : vector<2x128xf32>
    %14 = tpu.matmul %12, %13, %cst_9 {dimension_numbers = #tpu.dot_dimension_numbers<[1], [0], [0], [1], [0, 0, 1, 1], [], []>} : vector<2x256xbf16>, vector<256x128xbf16>, vector<2x128xf32> -> vector<2x128xf32>
    %c0_10 = arith.constant 0 : index
    %c0_11 = arith.constant 0 : index
    %15 = vector.load %arg5[%c0_10, %c0_11] : memref<1x128xf32, #tpu.memory_space<vmem>>, vector<1x128xf32>
    %16 = vector.broadcast %15 : vector<1x128xf32> to vector<2x128xf32>
    %17 = arith.addf %14, %16 : vector<2x128xf32>
    %cst_12 = arith.constant 0.000000e+00 : f32
    %18 = vector.broadcast %cst_12 : f32 to vector<2x128xf32>
    %19 = arith.cmpf ogt, %17, %18 : vector<2x128xf32>
    %cst_13 = arith.constant 0.00999999977 : f32
    %20 = vector.broadcast %cst_13 : f32 to vector<2x128xf32>
    %21 = arith.mulf %20, %17 : vector<2x128xf32>
    %22 = arith.select %19, %17, %21 : vector<2x128xi1>, vector<2x128xf32>
    %23 = arith.truncf %22 : vector<2x128xf32> to vector<2x128xbf16>
    %c0_14 = arith.constant 0 : index
    %c0_15 = arith.constant 0 : index
    %24 = vector.load %arg6[%c0_14, %c0_15] : memref<128x128xbf16, #tpu.memory_space<vmem>>, vector<128x128xbf16>
    %cst_16 = arith.constant dense<0.000000e+00> : vector<2x128xf32>
    %25 = tpu.matmul %23, %24, %cst_16 {dimension_numbers = #tpu.dot_dimension_numbers<[1], [0], [0], [1], [0, 0, 1, 1], [], []>} : vector<2x128xbf16>, vector<128x128xbf16>, vector<2x128xf32> -> vector<2x128xf32>
    %c0_17 = arith.constant 0 : index
    %c0_18 = arith.constant 0 : index
    %26 = vector.load %arg7[%c0_17, %c0_18] : memref<1x128xf32, #tpu.memory_space<vmem>>, vector<1x128xf32>
    %27 = vector.broadcast %26 : vector<1x128xf32> to vector<2x128xf32>
    %28 = arith.addf %25, %27 : vector<2x128xf32>
    %cst_19 = arith.constant 0.000000e+00 : f32
    %29 = vector.broadcast %cst_19 : f32 to vector<2x128xf32>
    %30 = arith.cmpf ogt, %28, %29 : vector<2x128xf32>
    %cst_20 = arith.constant 0.00999999977 : f32
    %31 = vector.broadcast %cst_20 : f32 to vector<2x128xf32>
    %32 = arith.mulf %31, %28 : vector<2x128xf32>
    %33 = arith.select %30, %28, %32 : vector<2x128xi1>, vector<2x128xf32>
    %34 = arith.truncf %33 : vector<2x128xf32> to vector<2x128xbf16>
    %c0_21 = arith.constant 0 : index
    %c0_22 = arith.constant 0 : index
    %35 = vector.load %arg8[%c0_21, %c0_22] : memref<128x128xbf16, #tpu.memory_space<vmem>>, vector<128x128xbf16>
    %cst_23 = arith.constant dense<0.000000e+00> : vector<2x128xf32>
    %36 = tpu.matmul %34, %35, %cst_23 {dimension_numbers = #tpu.dot_dimension_numbers<[1], [0], [0], [1], [0, 0, 1, 1], [], []>} : vector<2x128xbf16>, vector<128x128xbf16>, vector<2x128xf32> -> vector<2x128xf32>
    %c0_24 = arith.constant 0 : index
    %c0_25 = arith.constant 0 : index
    %37 = vector.load %arg9[%c0_24, %c0_25] : memref<1x128xf32, #tpu.memory_space<vmem>>, vector<1x128xf32>
    %38 = vector.broadcast %37 : vector<1x128xf32> to vector<2x128xf32>
    %39 = arith.addf %36, %38 : vector<2x128xf32>
    %40 = arith.truncf %39 : vector<2x128xf32> to vector<2x128xbf16>
    %c0_26 = arith.constant 0 : index
    %c0_27 = arith.constant 0 : index
    %41 = vector.load %arg10[%c0_26, %c0_27] : memref<2x128xbf16, #tpu.memory_space<vmem>>, vector<2x128xbf16>
    tpu.vector_store %arg10[%c0_26, %c0_27], %40 {strides = array<i32>} : memref<2x128xbf16, #tpu.memory_space<vmem>>, vector<2x128xbf16>,
    return
  }
  func.func @transform_0(%arg0: i32) -> (i32, i32) {
    %c0_i32 = arith.constant 0 : i32
    %c0_i32_0 = arith.constant 0 : i32
    return %arg0, %c0_i32 : i32, i32
  }
  func.func @transform_1(%arg0: i32) -> (i32, i32) {
    %c0_i32 = arith.constant 0 : i32
    %c0_i32_0 = arith.constant 0 : i32
    %c0_i32_1 = arith.constant 0 : i32
    return %c0_i32, %c0_i32_0 : i32, i32
  }
  func.func @transform_2(%arg0: i32) -> (i32, i32) {
    %c0_i32 = arith.constant 0 : i32
    %c0_i32_0 = arith.constant 0 : i32
    %c0_i32_1 = arith.constant 0 : i32
    return %c0_i32, %c0_i32_0 : i32, i32
  }
  func.func @transform_3(%arg0: i32) -> (i32, i32) {
    %c0_i32 = arith.constant 0 : i32
    %c0_i32_0 = arith.constant 0 : i32
    %c0_i32_1 = arith.constant 0 : i32
    return %c0_i32, %c0_i32_0 : i32, i32
  }
  func.func @transform_4(%arg0: i32) -> (i32, i32) {
    %c0_i32 = arith.constant 0 : i32
    %c0_i32_0 = arith.constant 0 : i32
    %c0_i32_1 = arith.constant 0 : i32
    return %c0_i32, %c0_i32_0 : i32, i32
  }
  func.func @transform_5(%arg0: i32) -> (i32, i32) {
    %c0_i32 = arith.constant 0 : i32
    %c0_i32_0 = arith.constant 0 : i32
    %c0_i32_1 = arith.constant 0 : i32
    return %c0_i32, %c0_i32_0 : i32, i32
  }
  func.func @transform_6(%arg0: i32) -> (i32, i32) {
    %c0_i32 = arith.constant 0 : i32
    %c0_i32_0 = arith.constant 0 : i32
    %c0_i32_1 = arith.constant 0 : i32
    return %c0_i32, %c0_i32_0 : i32, i32
  }
  func.func @transform_7(%arg0: i32) -> (i32, i32) {
    %c0_i32 = arith.constant 0 : i32
    %c0_i32_0 = arith.constant 0 : i32
    %c0_i32_1 = arith.constant 0 : i32
    return %c0_i32, %c0_i32_0 : i32, i32
  }
  func.func @transform_8(%arg0: i32) -> (i32, i32) {
    %c0_i32 = arith.constant 0 : i32
    %c0_i32_0 = arith.constant 0 : i32
    %c0_i32_1 = arith.constant 0 : i32
    return %c0_i32, %c0_i32_0 : i32, i32
  }
  func.func @transform_9(%arg0: i32) -> (i32, i32) {
    %c0_i32 = arith.constant 0 : i32
    %c0_i32_0 = arith.constant 0 : i32
    return %arg0, %c0_i32 : i32, i32
  }
}

</mosaic_0001>

<llo_original>
// kernel: neural_network_forward.1
$region0: #{neural_network_forward.1}
  #allocation0 [shape = 'u32[]', space=smem, size = 0x4, offset = 0x4, fixed_abs, tag = 'smem constant byte address 0x4 - core index']
  #allocation1 [shape = 'u32[72,128]{1,0:T(1,128)}', space=vmem, size = 0x9000, scoped, tag = 'internal scratch']
  %s0 = inlined_call_operand.hbm [shape: f32[2,32], index: 0, kind: input, shape index: {}]
  %s1 = inlined_call_operand.hbm [shape: bf16[32,256], index: 1, kind: input, shape index: {}]
  %s2 = inlined_call_operand.hbm [shape: f32[1,256], index: 2, kind: input, shape index: {}]
  %s3 = inlined_call_operand.hbm [shape: bf16[256,128], index: 3, kind: input, shape index: {}]
  %s4 = inlined_call_operand.vmem [shape: f32[1,128], index: 4, kind: input, shape index: {}]
  %s5 = inlined_call_operand.hbm [shape: bf16[128,128], index: 5, kind: input, shape index: {}]
  %s6 = inlined_call_operand.vmem [shape: f32[1,128], index: 6, kind: input, shape index: {}]
  %s7 = inlined_call_operand.hbm [shape: bf16[128,128], index: 7, kind: input, shape index: {}]
  %s8 = inlined_call_operand.vmem [shape: f32[1,128], index: 8, kind: input, shape index: {}]
  %s9 = inlined_call_operand.vmem [shape: bf16[2,128], index: 9, kind: output, shape index: {}]
  %s10 = sld [smem:[#allocation0]]
  $region70: #{neural_network_forward.1} parent=0
    _
  %s12 = ssub.s32 1, %s10
  %s13 = scalar_select 0, %s12, %s10
  $region1: #{neural_network_forward.1} parent=0
    #allocation2 [shape = 'u8[1024]{0}', space=vmem, size = 0x400, scoped, tag = 'input window, operand 0, single buffered']
    #allocation3 [shape = 's32[1]{0}', space=sflag, size = 0x4, scoped, tag = 'scoped memory for neural_network_forward.1']
    #allocation4 [shape = 'u8[16384]{0}', space=vmem, size = 0x4000, scoped, tag = 'input window, operand 1, single buffered']
    #allocation5 [shape = 's32[1]{0}', space=sflag, size = 0x4, scoped, tag = 'scoped memory for neural_network_forward.1']
    #allocation6 [shape = 'u8[1024]{0}', space=vmem, size = 0x400, scoped, tag = 'input window, operand 2, single buffered']
    #allocation7 [shape = 'u8[65536]{0}', space=vmem, size = 0x10000, scoped, tag = 'input window, operand 3, single buffered']
    #allocation8 [shape = 's32[1]{0}', space=sflag, size = 0x4, scoped, tag = 'scoped memory for neural_network_forward.1']
    #allocation9 [shape = 'u8[32768]{0}', space=vmem, size = 0x8000, scoped, tag = 'input window, operand 5, single buffered']
    #allocation10 [shape = 'u8[32768]{0}', space=vmem, size = 0x8000, scoped, tag = 'input window, operand 7, single buffered']
    #allocation11 [shape = 's32[1]{0}', space=sflag, size = 0x4, scoped, tag = 'scoped memory for neural_network_forward.1']
    %14 = vsyncpa [#allocation3], 0
    %15 = vsyncpa [#allocation5], 0
    %16 = vsyncpa [#allocation8], 0
    %17 = vsyncpa [#allocation11], 0
    // Predicated region
    $region2: #{neural_network_forward.1} parent=1 // pred_check
      _
    $region3: #{neural_network_forward.1} parent=1 // pred_check_branch
      %19 = sbr.rel (0) target = $region5
    $region4: #{neural_network_forward.1} parent=1 // pred_region
      %21 = vsyncadd [#allocation3], 0
      %s23 = sshll.u32 %s0, 4
      %s24 = int_to_ptr.hbm [resolvable:$true] %s23
      %s25 = sshll.u32 [#allocation2], 4
      %s26 = int_to_ptr.vmem [resolvable:$true] %s25
      %28 = dma.hbm_to_vmem [thread:$0]  %s24, 32, %s26, [#allocation3]
    $region5: #{neural_network_forward.1} parent=1 // pred_fallthru
      _
    // Predicated region
    $region6: #{neural_network_forward.1} parent=1 // pred_check
      _
    $region7: #{neural_network_forward.1} parent=1 // pred_check_branch
      %30 = sbr.rel (0) target = $region9
    $region8: #{neural_network_forward.1} parent=1 // pred_region
      %32 = vsyncadd [#allocation5], 0
      %s33 = sshll.u32 %s1, 4
      %s34 = int_to_ptr.hbm [resolvable:$true] %s33
      %s35 = sshll.u32 [#allocation4], 4
      %s36 = int_to_ptr.vmem [resolvable:$true] %s35
      %41 = dma.hbm_to_vmem [thread:$0]  %s34, 512, %s36, [#allocation5], 128, 128, 8
    $region9: #{neural_network_forward.1} parent=1 // pred_fallthru
      _
    // Predicated region
    $region10: #{neural_network_forward.1} parent=1 // pred_check
      _
    $region11: #{neural_network_forward.1} parent=1 // pred_check_branch
      %43 = sbr.rel (0) target = $region13
    $region12: #{neural_network_forward.1} parent=1 // pred_region
      %45 = vsyncadd [#allocation5], 0
      %s47 = sshll.u32 %s2, 4
      %s48 = int_to_ptr.hbm [resolvable:$true] %s47
      %s49 = sshll.u32 [#allocation6], 4
      %s50 = int_to_ptr.vmem [resolvable:$true] %s49
      %52 = dma.hbm_to_vmem [thread:$0]  %s48, 32, %s50, [#allocation5]
    $region13: #{neural_network_forward.1} parent=1 // pred_fallthru
      _
    // Predicated region
    $region14: #{neural_network_forward.1} parent=1 // pred_check
      _
    $region15: #{neural_network_forward.1} parent=1 // pred_check_branch
      %54 = sbr.rel (0) target = $region17
    $region16: #{neural_network_forward.1} parent=1 // pred_region
      %56 = vsyncadd [#allocation8], 0
      %s57 = sshll.u32 %s3, 4
      %s58 = int_to_ptr.hbm [resolvable:$true] %s57
      %s59 = sshll.u32 [#allocation7], 4
      %s60 = int_to_ptr.vmem [resolvable:$true] %s59
      %65 = dma.hbm_to_vmem [thread:$0]  %s58, 2048, %s60, [#allocation8], 64, 64, 4
    $region17: #{neural_network_forward.1} parent=1 // pred_fallthru
      _
    // Predicated region
    $region18: #{neural_network_forward.1} parent=1 // pred_check
      _
    $region19: #{neural_network_forward.1} parent=1 // pred_check_branch
      %67 = sbr.rel (0) target = $region21
    $region20: #{neural_network_forward.1} parent=1 // pred_region
      _
    $region21: #{neural_network_forward.1} parent=1 // pred_fallthru
      _
    // Predicated region
    $region22: #{neural_network_forward.1} parent=1 // pred_check
      _
    $region23: #{neural_network_forward.1} parent=1 // pred_check_branch
      %69 = sbr.rel (0) target = $region25
    $region24: #{neural_network_forward.1} parent=1 // pred_region
      %71 = vsyncadd [#allocation8], 0
      %s72 = sshll.u32 %s5, 4
      %s73 = int_to_ptr.hbm [resolvable:$true] %s72
      %s74 = sshll.u32 [#allocation9], 4
      %s75 = int_to_ptr.vmem [resolvable:$true] %s74
      %80 = dma.hbm_to_vmem [thread:$0]  %s73, 1024, %s75, [#allocation8], 64, 64, 4
    $region25: #{neural_network_forward.1} parent=1 // pred_fallthru
      _
    // Predicated region
    $region26: #{neural_network_forward.1} parent=1 // pred_check
      _
    $region27: #{neural_network_forward.1} parent=1 // pred_check_branch
      %82 = sbr.rel (0) target = $region29
    $region28: #{neural_network_forward.1} parent=1 // pred_region
      _
    $region29: #{neural_network_forward.1} parent=1 // pred_fallthru
      _
    // Predicated region
    $region30: #{neural_network_forward.1} parent=1 // pred_check
      _
    $region31: #{neural_network_forward.1} parent=1 // pred_check_branch
      %84 = sbr.rel (0) target = $region33
    $region32: #{neural_network_forward.1} parent=1 // pred_region
      %86 = vsyncadd [#allocation11], 0
      %s87 = sshll.u32 %s7, 4
      %s88 = int_to_ptr.hbm [resolvable:$true] %s87
      %s89 = sshll.u32 [#allocation10], 4
      %s90 = int_to_ptr.vmem [resolvable:$true] %s89
      %95 = dma.hbm_to_vmem [thread:$0]  %s88, 1024, %s90, [#allocation11], 64, 64, 4
    $region33: #{neural_network_forward.1} parent=1 // pred_fallthru
      _
    // Predicated region
    $region34: #{neural_network_forward.1} parent=1 // pred_check
      _
    $region35: #{neural_network_forward.1} parent=1 // pred_check_branch
      %97 = sbr.rel (0) target = $region37
    $region36: #{neural_network_forward.1} parent=1 // pred_region
      _
    $region37: #{neural_network_forward.1} parent=1 // pred_fallthru
      _
    // Predicated region
    $region38: #{neural_network_forward.1} parent=1 // pred_check
      _
    $region39: #{neural_network_forward.1} parent=1 // pred_check_branch
      %99 = sbr.rel (0) target = $region41
    $region40: #{neural_network_forward.1} parent=1 // pred_region
      %101 = dma.done [#allocation3], 32
    $region41: #{neural_network_forward.1} parent=1 // pred_fallthru
      _
    // Predicated region
    $region42: #{neural_network_forward.1} parent=1 // pred_check
      _
    $region43: #{neural_network_forward.1} parent=1 // pred_check_branch
      %103 = sbr.rel (0) target = $region45
    $region44: #{neural_network_forward.1} parent=1 // pred_region
      %105 = dma.done [#allocation5], 512
    $region45: #{neural_network_forward.1} parent=1 // pred_fallthru
      _
    // Predicated region
    $region46: #{neural_network_forward.1} parent=1 // pred_check
      _
    $region47: #{neural_network_forward.1} parent=1 // pred_check_branch
      %107 = sbr.rel (0) target = $region49
    $region48: #{neural_network_forward.1} parent=1 // pred_region
      %109 = dma.done [#allocation5], 32
    $region49: #{neural_network_forward.1} parent=1 // pred_fallthru
      _
    // Predicated region
    $region50: #{neural_network_forward.1} parent=1 // pred_check
      _
    $region51: #{neural_network_forward.1} parent=1 // pred_check_branch
      %111 = sbr.rel (0) target = $region53
    $region52: #{neural_network_forward.1} parent=1 // pred_region
      %113 = dma.done [#allocation8], 2048
    $region53: #{neural_network_forward.1} parent=1 // pred_fallthru
      _
    // Predicated region
    $region54: #{neural_network_forward.1} parent=1 // pred_check
      _
    $region55: #{neural_network_forward.1} parent=1 // pred_check_branch
      %115 = sbr.rel (0) target = $region57
    $region56: #{neural_network_forward.1} parent=1 // pred_region
      %117 = dma.done [#allocation8], 1024
    $region57: #{neural_network_forward.1} parent=1 // pred_fallthru
      _
    // Predicated region
    $region58: #{neural_network_forward.1} parent=1 // pred_check
      _
    $region59: #{neural_network_forward.1} parent=1 // pred_check_branch
      %119 = sbr.rel (0) target = $region61
    $region60: #{neural_network_forward.1} parent=1 // pred_region
      %121 = dma.done [#allocation11], 1024
    $region61: #{neural_network_forward.1} parent=1 // pred_fallthru
      _
    %v123 = vld [vmem:[#allocation2] sm:$0x3]
    %v124 = vpack.c.bf16 %v123, %v123
    %v125 = vld [vmem:[#allocation4] sm:$0xff]
    %v126 = vld [vmem:[#allocation4 + $0x8] sm:$0xff]
    %v127 = vld [vmem:[#allocation4 + $0x10] sm:$0xff]
    %v128 = vld [vmem:[#allocation4 + $0x18] sm:$0xff]
    %v129 = vld [vmem:[#allocation6] sm:$0x3]
    %v131 = vperm.slane %v129, 0
    %v132 = vperm.slane %v129, 1
    %v139 = vunpack.c.l.b16 %v125
    %v140 = vunpack.c.h.b16 %v125
    %v141 = vunpack.c.l.b16 %v126
    %v142 = vunpack.c.h.b16 %v126
    %v143 = vunpack.c.l.b16 %v127
    %v144 = vunpack.c.h.b16 %v127
    %v145 = vunpack.c.l.b16 %v128
    %v146 = vunpack.c.h.b16 %v128
    %v147 = vpack.c.b16 %v141, %v139
    %v148 = vpack.c.b16 %v142, %v140
    %v149 = vpack.c.b16 %v145, %v143
    %v150 = vpack.c.b16 %v146, %v144
    %vm155 = vcmask 261120
    %v157 = vsel %vm155, %v124, 0
    %159 = vmatpush.bf16.msra.mxu0 0
    %160 = vmatpush.bf16.msra.mxu0 0
    %161 = vmatpush.bf16.msra.mxu0 0
    %162 = vmatpush.bf16.msra.mxu0 0
    %163 = vmatpush.bf16.msra.mxu0 0
    %164 = vmatpush.bf16.msra.mxu0 0
    %165 = vmatpush.bf16.msra.mxu0 %v149
    %166 = vmatpush.bf16.msra.mxu0 %v147
    %167 = vmatmul.bf16.gmra.mxu0 %v157
    %v168 = vpop.f32.mrf.mxu0
    %v169 = vadd.f32 %v131, %v168
    %v170 = vpop.f32.mrf.mxu0
    %171 = vdwg.mxu0
    %172 = vmatpush.bf16.msra.mxu0 0
    %173 = vmatpush.bf16.msra.mxu0 0
    %174 = vmatpush.bf16.msra.mxu0 0
    %175 = vmatpush.bf16.msra.mxu0 0
    %176 = vmatpush.bf16.msra.mxu0 0
    %177 = vmatpush.bf16.msra.mxu0 0
    %178 = vmatpush.bf16.msra.mxu0 %v150
    %179 = vmatpush.bf16.msra.mxu0 %v148
    %180 = vmatmul.bf16.gmra.mxu0 %v157
    %v181 = vpop.f32.mrf.mxu0
    %v182 = vadd.f32 %v132, %v181
    %v183 = vpop.f32.mrf.mxu0
    %184 = vdwg.mxu0
    %vm185 = vcmp.gt.f32.partialorder %v169, 0.0
    %vm186 = vcmp.gt.f32.partialorder %v182, 0.0
    %v187 = vmul.f32 %v169, 0.01
    %v188 = vmul.f32 %v182, 0.01
    %v189 = vsel %vm185, %v169, %v187
    %v190 = vsel %vm186, %v182, %v188
    %v191 = vpack.c.bf16 %v189, %v189
    %v192 = vpack.c.bf16 %v190, %v190
    %v193 = vld [vmem:[#allocation7] sm:$0xf]
    %v194 = vld [vmem:[#allocation7 + $0x4] sm:$0xf]
    %v195 = vld [vmem:[#allocation7 + $0x8] sm:$0xf]
    %v196 = vld [vmem:[#allocation7 + $0xc] sm:$0xf]
    %v197 = vld [vmem:[#allocation7 + $0x10] sm:$0xf]
    %v198 = vld [vmem:[#allocation7 + $0x14] sm:$0xf]
    %v199 = vld [vmem:[#allocation7 + $0x18] sm:$0xf]
    %v200 = vld [vmem:[#allocation7 + $0x1c] sm:$0xf]
    %v201 = vld [vmem:[#allocation7 + $0x20] sm:$0xf]
    %v202 = vld [vmem:[#allocation7 + $0x24] sm:$0xf]
    %v203 = vld [vmem:[#allocation7 + $0x28] sm:$0xf]
    %v204 = vld [vmem:[#allocation7 + $0x2c] sm:$0xf]
    %v205 = vld [vmem:[#allocation7 + $0x30] sm:$0xf]
    %v206 = vld [vmem:[#allocation7 + $0x34] sm:$0xf]
    %v207 = vld [vmem:[#allocation7 + $0x38] sm:$0xf]
    %v208 = vld [vmem:[#allocation7 + $0x3c] sm:$0xf]
    %v209 = vld [vmem:[#allocation7 + $0x40] sm:$0xf]
    %v210 = vld [vmem:[#allocation7 + $0x44] sm:$0xf]
    %v211 = vld [vmem:[#allocation7 + $0x48] sm:$0xf]
    %v212 = vld [vmem:[#allocation7 + $0x4c] sm:$0xf]
    %v213 = vld [vmem:[#allocation7 + $0x50] sm:$0xf]
    %v214 = vld [vmem:[#allocation7 + $0x54] sm:$0xf]
    %v215 = vld [vmem:[#allocation7 + $0x58] sm:$0xf]
    %v216 = vld [vmem:[#allocation7 + $0x5c] sm:$0xf]
    %v217 = vld [vmem:[#allocation7 + $0x60] sm:$0xf]
    %v218 = vld [vmem:[#allocation7 + $0x64] sm:$0xf]
    %v219 = vld [vmem:[#allocation7 + $0x68] sm:$0xf]
    %v220 = vld [vmem:[#allocation7 + $0x6c] sm:$0xf]
    %v221 = vld [vmem:[#allocation7 + $0x70] sm:$0xf]
    %v222 = vld [vmem:[#allocation7 + $0x74] sm:$0xf]
    %v223 = vld [vmem:[#allocation7 + $0x78] sm:$0xf]
    %v224 = vld [vmem:[#allocation7 + $0x7c] sm:$0xf]
    %v225 = vld [vmem:[%s4] sm:$0x1]
    %v227 = vperm.slane %v225, 0
    %v261 = vunpack.c.l.b16 %v193
    %v262 = vunpack.c.l.b16 %v194
    %v263 = vunpack.c.l.b16 %v195
    %v264 = vunpack.c.l.b16 %v196
    %v265 = vunpack.c.l.b16 %v197
    %v266 = vunpack.c.l.b16 %v198
    %v267 = vunpack.c.l.b16 %v199
    %v268 = vunpack.c.l.b16 %v200
    %v269 = vunpack.c.l.b16 %v201
    %v270 = vunpack.c.l.b16 %v202
    %v271 = vunpack.c.l.b16 %v203
    %v272 = vunpack.c.l.b16 %v204
    %v273 = vunpack.c.l.b16 %v205
    %v274 = vunpack.c.l.b16 %v206
    %v275 = vunpack.c.l.b16 %v207
    %v276 = vunpack.c.l.b16 %v208
    %v277 = vunpack.c.l.b16 %v209
    %v278 = vunpack.c.l.b16 %v210
    %v279 = vunpack.c.l.b16 %v211
    %v280 = vunpack.c.l.b16 %v212
    %v281 = vunpack.c.l.b16 %v213
    %v282 = vunpack.c.l.b16 %v214
    %v283 = vunpack.c.l.b16 %v215
    %v284 = vunpack.c.l.b16 %v216
    %v285 = vunpack.c.l.b16 %v217
    %v286 = vunpack.c.l.b16 %v218
    %v287 = vunpack.c.l.b16 %v219
    %v288 = vunpack.c.l.b16 %v220
    %v289 = vunpack.c.l.b16 %v221
    %v290 = vunpack.c.l.b16 %v222
    %v291 = vunpack.c.l.b16 %v223
    %v292 = vunpack.c.l.b16 %v224
    %v293 = vpack.c.b16 %v262, %v261
    %v294 = vpack.c.b16 %v264, %v263
    %v295 = vpack.c.b16 %v266, %v265
    %v296 = vpack.c.b16 %v268, %v267
    %v297 = vpack.c.b16 %v270, %v269
    %v298 = vpack.c.b16 %v272, %v271
    %v299 = vpack.c.b16 %v274, %v273
    %v300 = vpack.c.b16 %v276, %v275
    %v301 = vpack.c.b16 %v278, %v277
    %v302 = vpack.c.b16 %v280, %v279
    %v303 = vpack.c.b16 %v282, %v281
    %v304 = vpack.c.b16 %v284, %v283
    %v305 = vpack.c.b16 %v286, %v285
    %v306 = vpack.c.b16 %v288, %v287
    %v307 = vpack.c.b16 %v290, %v289
    %v308 = vpack.c.b16 %v292, %v291
    %325 = vmatpush.bf16.msra.mxu0 %v300
    %326 = vmatpush.bf16.msra.mxu0 %v299
    %327 = vmatpush.bf16.msra.mxu0 %v298
    %328 = vmatpush.bf16.msra.mxu0 %v297
    %329 = vmatpush.bf16.msra.mxu0 %v296
    %330 = vmatpush.bf16.msra.mxu0 %v295
    %331 = vmatpush.bf16.msra.mxu0 %v294
    %332 = vmatpush.bf16.msra.mxu0 %v293
    %333 = vmatmul.bf16.gmra.mxu0 %v191
    %v334 = vpop.f32.mrf.mxu0
    %v335 = vadd.f32 %v227, %v334
    %v336 = vpop.f32.mrf.mxu0
    %337 = vdwg.mxu0
    %338 = vmatpush.bf16.msra.mxu0 %v308
    %339 = vmatpush.bf16.msra.mxu0 %v307
    %340 = vmatpush.bf16.msra.mxu0 %v306
    %341 = vmatpush.bf16.msra.mxu0 %v305
    %342 = vmatpush.bf16.msra.mxu0 %v304
    %343 = vmatpush.bf16.msra.mxu0 %v303
    %344 = vmatpush.bf16.msra.mxu0 %v302
    %345 = vmatpush.bf16.msra.mxu0 %v301
    %346 = vmatmul.bf16.gmra.mxu0 %v192
    %v347 = vpop.f32.mrf.mxu0
    %v348 = vadd.f32 %v335, %v347
    %v349 = vpop.f32.mrf.mxu0
    %350 = vdwg.mxu0
    %vm351 = vcmp.gt.f32.partialorder %v348, 0.0
    %v352 = vmul.f32 %v348, 0.01
    %v353 = vsel %vm351, %v348, %v352
    %v354 = vpack.c.bf16 %v353, %v353
    %v355 = vld [vmem:[#allocation9] sm:$0xf]
    %v356 = vld [vmem:[#allocation9 + $0x4] sm:$0xf]
    %v357 = vld [vmem:[#allocation9 + $0x8] sm:$0xf]
    %v358 = vld [vmem:[#allocation9 + $0xc] sm:$0xf]
    %v359 = vld [vmem:[#allocation9 + $0x10] sm:$0xf]
    %v360 = vld [vmem:[#allocation9 + $0x14] sm:$0xf]
    %v361 = vld [vmem:[#allocation9 + $0x18] sm:$0xf]
    %v362 = vld [vmem:[#allocation9 + $0x1c] sm:$0xf]
    %v363 = vld [vmem:[#allocation9 + $0x20] sm:$0xf]
    %v364 = vld [vmem:[#allocation9 + $0x24] sm:$0xf]
    %v365 = vld [vmem:[#allocation9 + $0x28] sm:$0xf]
    %v366 = vld [vmem:[#allocation9 + $0x2c] sm:$0xf]
    %v367 = vld [vmem:[#allocation9 + $0x30] sm:$0xf]
    %v368 = vld [vmem:[#allocation9 + $0x34] sm:$0xf]
    %v369 = vld [vmem:[#allocation9 + $0x38] sm:$0xf]
    %v370 = vld [vmem:[#allocation9 + $0x3c] sm:$0xf]
    %v371 = vld [vmem:[%s6] sm:$0x1]
    %v373 = vperm.slane %v371, 0
    %v391 = vunpack.c.l.b16 %v355
    %v392 = vunpack.c.l.b16 %v356
    %v393 = vunpack.c.l.b16 %v357
    %v394 = vunpack.c.l.b16 %v358
    %v395 = vunpack.c.l.b16 %v359
    %v396 = vunpack.c.l.b16 %v360
    %v397 = vunpack.c.l.b16 %v361
    %v398 = vunpack.c.l.b16 %v362
    %v399 = vunpack.c.l.b16 %v363
    %v400 = vunpack.c.l.b16 %v364
    %v401 = vunpack.c.l.b16 %v365
    %v402 = vunpack.c.l.b16 %v366
    %v403 = vunpack.c.l.b16 %v367
    %v404 = vunpack.c.l.b16 %v368
    %v405 = vunpack.c.l.b16 %v369
    %v406 = vunpack.c.l.b16 %v370
    %v407 = vpack.c.b16 %v392, %v391
    %v408 = vpack.c.b16 %v394, %v393
    %v409 = vpack.c.b16 %v396, %v395
    %v410 = vpack.c.b16 %v398, %v397
    %v411 = vpack.c.b16 %v400, %v399
    %v412 = vpack.c.b16 %v402, %v401
    %v413 = vpack.c.b16 %v404, %v403
    %v414 = vpack.c.b16 %v406, %v405
    %423 = vmatpush.bf16.msra.mxu0 %v414
    %424 = vmatpush.bf16.msra.mxu0 %v413
    %425 = vmatpush.bf16.msra.mxu0 %v412
    %426 = vmatpush.bf16.msra.mxu0 %v411
    %427 = vmatpush.bf16.msra.mxu0 %v410
    %428 = vmatpush.bf16.msra.mxu0 %v409
    %429 = vmatpush.bf16.msra.mxu0 %v408
    %430 = vmatpush.bf16.msra.mxu0 %v407
    %431 = vmatmul.bf16.gmra.mxu0 %v354
    %v432 = vpop.f32.mrf.mxu0
    %v433 = vadd.f32 %v373, %v432
    %v434 = vpop.f32.mrf.mxu0
    %435 = vdwg.mxu0
    %vm436 = vcmp.gt.f32.partialorder %v433, 0.0
    %v437 = vmul.f32 %v433, 0.01
    %v438 = vsel %vm436, %v433, %v437
    %v439 = vpack.c.bf16 %v438, %v438
    %v440 = vld [vmem:[#allocation10] sm:$0xf]
    %v441 = vld [vmem:[#allocation10 + $0x4] sm:$0xf]
    %v442 = vld [vmem:[#allocation10 + $0x8] sm:$0xf]
    %v443 = vld [vmem:[#allocation10 + $0xc] sm:$0xf]
    %v444 = vld [vmem:[#allocation10 + $0x10] sm:$0xf]
    %v445 = vld [vmem:[#allocation10 + $0x14] sm:$0xf]
    %v446 = vld [vmem:[#allocation10 + $0x18] sm:$0xf]
    %v447 = vld [vmem:[#allocation10 + $0x1c] sm:$0xf]
    %v448 = vld [vmem:[#allocation10 + $0x20] sm:$0xf]
    %v449 = vld [vmem:[#allocation10 + $0x24] sm:$0xf]
    %v450 = vld [vmem:[#allocation10 + $0x28] sm:$0xf]
    %v451 = vld [vmem:[#allocation10 + $0x2c] sm:$0xf]
    %v452 = vld [vmem:[#allocation10 + $0x30] sm:$0xf]
    %v453 = vld [vmem:[#allocation10 + $0x34] sm:$0xf]
    %v454 = vld [vmem:[#allocation10 + $0x38] sm:$0xf]
    %v455 = vld [vmem:[#allocation10 + $0x3c] sm:$0xf]
    %v456 = vld [vmem:[%s8] sm:$0x1]
    %v458 = vperm.slane %v456, 0
    %v476 = vunpack.c.l.b16 %v440
    %v477 = vunpack.c.l.b16 %v441
    %v478 = vunpack.c.l.b16 %v442
    %v479 = vunpack.c.l.b16 %v443
    %v480 = vunpack.c.l.b16 %v444
    %v481 = vunpack.c.l.b16 %v445
    %v482 = vunpack.c.l.b16 %v446
    %v483 = vunpack.c.l.b16 %v447
    %v484 = vunpack.c.l.b16 %v448
    %v485 = vunpack.c.l.b16 %v449
    %v486 = vunpack.c.l.b16 %v450
    %v487 = vunpack.c.l.b16 %v451
    %v488 = vunpack.c.l.b16 %v452
    %v489 = vunpack.c.l.b16 %v453
    %v490 = vunpack.c.l.b16 %v454
    %v491 = vunpack.c.l.b16 %v455
    %v492 = vpack.c.b16 %v477, %v476
    %v493 = vpack.c.b16 %v479, %v478
    %v494 = vpack.c.b16 %v481, %v480
    %v495 = vpack.c.b16 %v483, %v482
    %v496 = vpack.c.b16 %v485, %v484
    %v497 = vpack.c.b16 %v487, %v486
    %v498 = vpack.c.b16 %v489, %v488
    %v499 = vpack.c.b16 %v491, %v490
    %508 = vmatpush.bf16.msra.mxu0 %v499
    %509 = vmatpush.bf16.msra.mxu0 %v498
    %510 = vmatpush.bf16.msra.mxu0 %v497
    %511 = vmatpush.bf16.msra.mxu0 %v496
    %512 = vmatpush.bf16.msra.mxu0 %v495
    %513 = vmatpush.bf16.msra.mxu0 %v494
    %514 = vmatpush.bf16.msra.mxu0 %v493
    %515 = vmatpush.bf16.msra.mxu0 %v492
    %516 = vmatmul.bf16.gmra.mxu0 %v439
    %v517 = vpop.f32.mrf.mxu0
    %v518 = vadd.f32 %v458, %v517
    %v519 = vpop.f32.mrf.mxu0
    %520 = vdwg.mxu0
    %v521 = vpack.c.bf16 %v518, %v518
    %522 = vst [vmem:[%s9] sm:$0x1] %v521
    // Predicated region
    $region62: #{neural_network_forward.1} parent=1 // pred_check
      _
    $region63: #{neural_network_forward.1} parent=1 // pred_check_branch
      %524 = sbr.rel (0) target = $region65
    $region64: #{neural_network_forward.1} parent=1 // pred_region
      _
    $region65: #{neural_network_forward.1} parent=1 // pred_fallthru
      _
    // Predicated region
    $region66: #{neural_network_forward.1} parent=1 // pred_check
      _
    $region67: #{neural_network_forward.1} parent=1 // pred_check_branch
      %526 = sbr.rel (0) target = $region69
    $region68: #{neural_network_forward.1} parent=1 // pred_region
      _
    $region69: #{neural_network_forward.1} parent=1 // pred_fallthru
      _
    %527 = vsyncpa [#allocation3], 1
    %528 = vsyncpa [#allocation5], 1
    %529 = vsyncpa [#allocation8], 1
    %530 = vsyncpa [#allocation11], 1

</llo_original>
